<compile_context>
chip_gen: v6e
topology: v6e:2x2x1
jax: 0.10.0
libtpu: 0.0.40
codegen_flags: <defaults>
</compile_context>

<pallas_src>
import jax
import jax.numpy as jnp
from jax.experimental import pallas as pl
from jax.experimental.pallas import tpu as pltpu


def _abs_diff_partial_kernel(x_ref, t_ref, out_ref, acc_ref):
    """Accumulate sum(|x - t|) over the inner grid axis; one partial per outer chunk."""
    i = pl.program_id(1)

    @pl.when(i == 0)
    def _():
        acc_ref[...] = jnp.zeros_like(acc_ref)

    x = x_ref[...].astype(jnp.float32)
    t = t_ref[...].astype(jnp.float32)
    # Pure VPU work (sub / abs / add) -> co-issues with the DMA of the next block.
    acc_ref[...] += jnp.abs(x - t)

    @pl.when(i == pl.num_programs(1) - 1)
    def _():
        # Single cross-lane reduce per outer chunk, outside the hot loop.
        out_ref[0, 0] = jnp.sum(acc_ref[...])


def _abs_diff_sum_pallas(x2, t2, *, br, n_inner, outer):
    """sum(|x2 - t2|) over the first outer*n_inner*br rows of the (rows, lw) views."""
    _, lw = x2.shape
    in_map = lambda o, i: (o * n_inner + i, 0)
    kernel_elems = outer * n_inner * br * lw

    partials = pl.pallas_call(
        _abs_diff_partial_kernel,
        out_shape=jax.ShapeDtypeStruct((outer, 1), jnp.float32),
        grid_spec=pltpu.PrefetchScalarGridSpec(
            num_scalar_prefetch=0,
            grid=(outer, n_inner),
            in_specs=[
                pl.BlockSpec((br, lw), in_map),
                pl.BlockSpec((br, lw), in_map),
            ],
            out_specs=pl.BlockSpec(
                (1, 1), lambda o, i: (o, 0), memory_space=pltpu.SMEM
            ),
            scratch_shapes=[pltpu.VMEM((br, lw), jnp.float32)],
        ),
        compiler_params=pltpu.CompilerParams(
            dimension_semantics=("parallel", "arbitrary"),
        ),
        cost_estimate=pl.CostEstimate(
            flops=3 * kernel_elems,
            transcendentals=0,
            bytes_accessed=2 * kernel_elems * x2.dtype.itemsize + 4 * outer,
        ),
    )(x2, t2)
    return jnp.sum(partials)


def laplace_nll(x, target, scale=1.0, *, lane_width=1024,
                target_block_bytes=2 * 1024 * 1024, outer_chunks=2):
    """Scalar Laplace NLL matching the PyTorch module's forward pass."""
    assert x.shape == target.shape
    assert x.ndim >= 1
    # TODO(synk): only a Python-scalar `scale` is supported (as in the PyTorch
    # module); per-element / learned scale tensors would need a third input.
    scale = float(scale)

    d = x.shape[-1]
    n = 1
    for s in x.shape:
        n *= s
    r = n // d  # number of rows the mean runs over

    # Widest lane width (multiple of 128) that exactly divides n -> the
    # flattened lane-dense view needs no padding copy.
    lw = None
    for cand in (lane_width, 512, 256, 128):
        if cand >= 128 and cand % 128 == 0 and n % cand == 0:
            lw = cand
            break
    if lw is None:
        lw = lane_width if n >= lane_width else 128

    rows = n // lw
    x_flat = x.reshape(-1)
    t_flat = target.reshape(-1)

    if rows == 0:
        # Tiny input: not worth a kernel launch.
        total_abs = jnp.sum(jnp.abs(x_flat.astype(jnp.float32)
                                    - t_flat.astype(jnp.float32)))
    else:
        bulk = rows * lw
        x2 = x_flat[:bulk].reshape(rows, lw)
        t2 = t_flat[:bulk].reshape(rows, lw)

        # Block rows: ~target_block_bytes of f32 per input block; a multiple of
        # 8, or the full row count (always a legal block extent).
        br = max(8, (target_block_bytes // (lw * 4)) // 8 * 8)
        br = min(br, rows)
        row_blocks = rows // br  # full blocks handled by the kernel

        # Split the row blocks across a leading "parallel" axis (v7x megacore)
        # only when it divides evenly; otherwise a single outer chunk.
        outer = outer_chunks if (row_blocks >= outer_chunks
                                 and row_blocks % outer_chunks == 0) else 1
        n_inner = row_blocks // outer

        total_abs = _abs_diff_sum_pallas(x2, t2, br=br, n_inner=n_inner,
                                         outer=outer)

        # Remainders never touched by the kernel's grid (each < one block),
        # summed in plain JAX -- avoids partial/padded blocks entirely.
        kernel_rows = row_blocks * br
        if kernel_rows < rows:          # < br trailing rows of the 2-D view
            total_abs = total_abs + jnp.sum(
                jnp.abs(x2[kernel_rows:].astype(jnp.float32)
                        - t2[kernel_rows:].astype(jnp.float32)))
        if bulk < n:                    # < lw trailing flat elements
            total_abs = total_abs + jnp.sum(
                jnp.abs(x_flat[bulk:].astype(jnp.float32)
                        - t_flat[bulk:].astype(jnp.float32)))

    log_term = jnp.log(jnp.float32(2.0 * scale))
    # sum over the last dim adds D copies of log(2*scale) per row; the mean
    # over rows divides the |x - t| total by (scale * R).
    return jnp.float32(d) * log_term + total_abs / jnp.float32(scale * r)


if __name__ == "__main__":
    key = jax.random.PRNGKey(0)
    kx, kt = jax.random.split(key)

    # small shapes consistent with a generic (B, C, H, W) prediction tensor
    shape = (2, 4, 16, 16)
    x = jax.random.normal(kx, shape, dtype=jnp.float32)
    target = jax.random.normal(kt, shape, dtype=jnp.float32)
    scale = 1.0

    out = laplace_nll(x, target, scale=scale)
    out = jax.block_until_ready(out)

    # pure-JAX reference of the PyTorch forward
    log = jnp.log(jnp.float32(2.0 * scale))
    ref = jnp.mean(jnp.sum(log + jnp.abs(x - target) / scale, axis=-1))

    assert jnp.allclose(out, ref, rtol=1e-5, atol=1e-5), (out, ref)
    print("KERNEL_OK")
</pallas_src>

<mosaic_0001>
module attributes {stable_mosaic.version = 11 : i64} {
  func.func @_abs_diff_partial_kernel(%arg0: i32, %arg1: i32, %arg2: memref<2x1024xf32, #tpu.memory_space<vmem>>, %arg3: memref<2x1024xf32, #tpu.memory_space<vmem>>, %arg4: memref<1x1xf32, #tpu.memory_space<smem>>, %arg5: memref<2x1024xf32, #tpu.memory_space<vmem>>) attributes {dimension_semantics = [#tpu.dimension_semantics<parallel>, #tpu.dimension_semantics<arbitrary>], iteration_bounds = array<i64: 1, 1>, scalar_prefetch = 0 : i64, scratch_operands = 1 : i64, tpu.core_type = #tpu.core_type<tc>, window_params = [{transform_indices = @transform_0, window_bounds = array<i64: 2, 1024>}, {transform_indices = @transform_1, window_bounds = array<i64: 2, 1024>}, {transform_indices = @transform_2, window_bounds = array<i64: 1, 1>}]} {
    %c0_i32 = arith.constant 0 : i32
    %0 = arith.cmpi eq, %arg1, %c0_i32 : i32
    %1 = arith.extui %0 : i1 to i32
    %c0_i32_0 = arith.constant 0 : i32
    %2 = arith.cmpi ne, %1, %c0_i32_0 : i32
    scf.if %2 {
      %cst = arith.constant 0.000000e+00 : f32
      %13 = vector.broadcast %cst : f32 to vector<2x1024xf32>
      %c0_10 = arith.constant 0 : index
      %c0_11 = arith.constant 0 : index
      %14 = vector.load %arg5[%c0_10, %c0_11] : memref<2x1024xf32, #tpu.memory_space<vmem>>, vector<2x1024xf32>
      tpu.vector_store %arg5[%c0_10, %c0_11], %13 {strides = array<i32>} : memref<2x1024xf32, #tpu.memory_space<vmem>>, vector<2x1024xf32>,
    } else {
    }
    %c0 = arith.constant 0 : index
    %c0_1 = arith.constant 0 : index
    %3 = vector.load %arg2[%c0, %c0_1] : memref<2x1024xf32, #tpu.memory_space<vmem>>, vector<2x1024xf32>
    %c0_2 = arith.constant 0 : index
    %c0_3 = arith.constant 0 : index
    %4 = vector.load %arg3[%c0_2, %c0_3] : memref<2x1024xf32, #tpu.memory_space<vmem>>, vector<2x1024xf32>
    %c0_4 = arith.constant 0 : index
    %c0_5 = arith.constant 0 : index
    %5 = vector.load %arg5[%c0_4, %c0_5] : memref<2x1024xf32, #tpu.memory_space<vmem>>, vector<2x1024xf32>
    %6 = arith.subf %3, %4 : vector<2x1024xf32>
    %7 = math.absf %6 : vector<2x1024xf32>
    %8 = arith.addf %5, %7 : vector<2x1024xf32>
    %c0_6 = arith.constant 0 : index
    %c0_7 = arith.constant 0 : index
    %9 = vector.load %arg5[%c0_6, %c0_7] : memref<2x1024xf32, #tpu.memory_space<vmem>>, vector<2x1024xf32>
    tpu.vector_store %arg5[%c0_6, %c0_7], %8 {strides = array<i32>} : memref<2x1024xf32, #tpu.memory_space<vmem>>, vector<2x1024xf32>,
    %c0_i32_8 = arith.constant 0 : i32
    %10 = arith.cmpi eq, %arg1, %c0_i32_8 : i32
    %11 = arith.extui %10 : i1 to i32
    %c0_i32_9 = arith.constant 0 : i32
    %12 = arith.cmpi ne, %11, %c0_i32_9 : i32
    scf.if %12 {
      %c0_10 = arith.constant 0 : index
      %c0_11 = arith.constant 0 : index
      %13 = vector.load %arg5[%c0_10, %c0_11] : memref<2x1024xf32, #tpu.memory_space<vmem>>, vector<2x1024xf32>
      %14 = vector.shape_cast %13 : vector<2x1024xf32> to vector<1x2x1024xf32>
      %cst = arith.constant dense<0.000000e+00> : vector<1xf32>
      %15 = vector.multi_reduction <add>, %14, %cst [1, 2] : vector<1x2x1024xf32> to vector<1xf32>
      %16 = vector.shape_cast %15 : vector<1xf32> to vector<1x1x1xf32>
      %17 = vector.extract %16[0, 0, 0] : f32 from vector<1x1x1xf32>
      %c0_12 = arith.constant 0 : index
      %c0_13 = arith.constant 0 : index
      %18 = memref.load %arg4[%c0_12, %c0_13] : memref<1x1xf32, #tpu.memory_space<smem>>
      memref.store %17, %arg4[%c0_12, %c0_13] : memref<1x1xf32, #tpu.memory_space<smem>>
    } else {
    }
    return
  }
  func.func @transform_0(%arg0: i32, %arg1: i32) -> (i32, i32) {
    %c1_i32 = arith.constant 1 : i32
    %0 = arith.muli %arg0, %c1_i32 : i32
    %1 = arith.addi %0, %arg1 : i32
    %c0_i32 = arith.constant 0 : i32
    %c0_i32_0 = arith.constant 0 : i32
    return %1, %c0_i32 : i32, i32
  }
  func.func @transform_1(%arg0: i32, %arg1: i32) -> (i32, i32) {
    %c1_i32 = arith.constant 1 : i32
    %0 = arith.muli %arg0, %c1_i32 : i32
    %1 = arith.addi %0, %arg1 : i32
    %c0_i32 = arith.constant 0 : i32
    %c0_i32_0 = arith.constant 0 : i32
    return %1, %c0_i32 : i32, i32
  }
  func.func @transform_2(%arg0: i32, %arg1: i32) -> (i32, i32) {
    %c0_i32 = arith.constant 0 : i32
    %c0_i32_0 = arith.constant 0 : i32
    return %arg0, %c0_i32 : i32, i32
  }
}

</mosaic_0001>

<llo_original>
// kernel: tpu_custom_call.1
$region0: #{tpu_custom_call.1}
  #allocation0 [shape = 'u32[]', space=smem, size = 0x4, offset = 0x4, fixed_abs, tag = 'smem constant byte address 0x4 - core index']
  #allocation1 [shape = 'u32[144,128]{1,0:T(1,128)}', space=vmem, size = 0x12000, scoped, tag = 'internal scratch']
  #allocation2 [shape = 'f32[2,1024]{1,0:T(2,128)}', space=vmem, size = 0x2000, scoped, tag = 'scratch operand']
  %s0 = inlined_call_operand.hbm [shape: f32[2,1024], index: 0, kind: input, shape index: {}]
  %s1 = inlined_call_operand.hbm [shape: f32[2,1024], index: 1, kind: input, shape index: {}]
  %s2 = inlined_call_operand.hbm [shape: f32[1,1], index: 2, kind: output, shape index: {}]
  %s3 = sld [smem:[#allocation0]]
  $region34: #{tpu_custom_call.1} parent=0
    _
  %s5 = ssub.s32 1, %s3
  %s6 = scalar_select 0, %s5, %s3
  $region1: #{tpu_custom_call.1} parent=0
    #allocation3 [shape = 'u8[8192]{0}', space=vmem, size = 0x2000, scoped, tag = 'input window, operand 0, single buffered']
    #allocation4 [shape = 's32[1]{0}', space=sflag, size = 0x4, scoped, tag = 'scoped memory for tpu_custom_call.1']
    #allocation5 [shape = 's32[1]{0}', space=sflag, size = 0x4, scoped, tag = 'scoped memory for tpu_custom_call.1']
    #allocation6 [shape = 'u8[8192]{0}', space=vmem, size = 0x2000, scoped, tag = 'input window, operand 1, single buffered']
    #allocation7 [shape = 's32[1]{0}', space=sflag, size = 0x4, scoped, tag = 'scoped memory for tpu_custom_call.1']
    #allocation8 [shape = 'u8[512]{0}', space=smem, size = 0x200, scoped, tag = 'output window, operand 0, single buffered']
    %7 = vsyncpa [#allocation4], 0
    %8 = vsyncpa [#allocation7], 0
    %9 = vsyncpa [#allocation5], 0
    // Predicated region
    $region2: #{tpu_custom_call.1} parent=1 // pred_check
      _
    $region3: #{tpu_custom_call.1} parent=1 // pred_check_branch
      %11 = sbr.rel (0) target = $region5
    $region4: #{tpu_custom_call.1} parent=1 // pred_region
      %s12 = sadd.s32 0, 0
      %s14 = ssub.s32 256, 256
      %15 = vsyncadd [#allocation4], %s14
      %s16 = smul.addr %s12, 8
      %s17 = smul.addr %s16, 32
      %s18 = scalar_lea.hbm %s0, %s17
      %s20 = sshll.u32 [#allocation3], 4
      %s21 = int_to_ptr.vmem [resolvable:$true] %s20
      %23 = dma.hbm_to_vmem [thread:$0]  %s18, 256, %s21, [#allocation4]
    $region5: #{tpu_custom_call.1} parent=1 // pred_fallthru
      _
    // Predicated region
    $region6: #{tpu_custom_call.1} parent=1 // pred_check
      _
    $region7: #{tpu_custom_call.1} parent=1 // pred_check_branch
      %25 = sbr.rel (0) target = $region9
    $region8: #{tpu_custom_call.1} parent=1 // pred_region
      %s26 = sadd.s32 0, 0
      %s28 = ssub.s32 256, 256
      %29 = vsyncadd [#allocation7], %s28
      %s30 = smul.addr %s26, 8
      %s31 = smul.addr %s30, 32
      %s32 = scalar_lea.hbm %s1, %s31
      %s34 = sshll.u32 [#allocation6], 4
      %s35 = int_to_ptr.vmem [resolvable:$true] %s34
      %37 = dma.hbm_to_vmem [thread:$0]  %s32, 256, %s35, [#allocation7]
    $region9: #{tpu_custom_call.1} parent=1 // pred_fallthru
      _
    // Predicated region
    $region10: #{tpu_custom_call.1} parent=1 // pred_check
      _
    $region11: #{tpu_custom_call.1} parent=1 // pred_check_branch
      %39 = sbr.rel (0) target = $region13
    $region12: #{tpu_custom_call.1} parent=1 // pred_region
      %40 = dma.done [#allocation4], 256
    $region13: #{tpu_custom_call.1} parent=1 // pred_fallthru
      _
    // Predicated region
    $region14: #{tpu_custom_call.1} parent=1 // pred_check
      _
    $region15: #{tpu_custom_call.1} parent=1 // pred_check_branch
      %42 = sbr.rel (0) target = $region17
    $region16: #{tpu_custom_call.1} parent=1 // pred_region
      %43 = dma.done [#allocation7], 256
    $region17: #{tpu_custom_call.1} parent=1 // pred_fallthru
      _
    %s44 = sadd.s32 0, 0
    %s45 = sadd.s32 0, 0
    %p46 = scmp.eq.s32.totalorder 0, 0
    // Predicated region
    $region18: #{tpu_custom_call.1} parent=1 // pred_check
      %p47 = pneg %p46
    $region19: #{tpu_custom_call.1} parent=1 // pred_check_branch
      %49 = sbr.rel (%p47) target = $region21
    $region20: #{tpu_custom_call.1} parent=1 // pred_region
      %50 = vst [vmem:[#allocation2] sm:$0xff] 0.0
      %51 = vst [vmem:[#allocation2 + $0x8] sm:$0xff] 0.0
    $region21: #{tpu_custom_call.1} parent=1 // pred_fallthru
      _
    %v52 = vld [vmem:[#allocation3] sm:$0xff]
    %v53 = vld [vmem:[#allocation3 + $0x8] sm:$0xff]
    %v54 = vld [vmem:[#allocation6] sm:$0xff]
    %v55 = vld [vmem:[#allocation6 + $0x8] sm:$0xff]
    %v56 = vld [vmem:[#allocation2] sm:$0xff]
    %v57 = vld [vmem:[#allocation2 + $0x8] sm:$0xff]
    %v58 = vsub.f32 %v52, %v54
    %v59 = vsub.f32 %v53, %v55
    %v60 = vand.u32 2147483647, %v58
    %v61 = vand.u32 2147483647, %v59
    %v62 = vadd.f32 %v56, %v60
    %v63 = vadd.f32 %v57, %v61
    %64 = vst [vmem:[#allocation2] sm:$0xff] %v62
    %65 = vst [vmem:[#allocation2 + $0x8] sm:$0xff] %v63
    // Predicated region
    $region22: #{tpu_custom_call.1} parent=1 // pred_check
      %p66 = pneg %p46
    $region23: #{tpu_custom_call.1} parent=1 // pred_check_branch
      %68 = sbr.rel (%p66) target = $region25
    $region24: #{tpu_custom_call.1} parent=1 // pred_region
      %v69 = vld [vmem:[#allocation2] sm:$0xff]
      %v70 = vld [vmem:[#allocation2 + $0x8] sm:$0xff]
      %v73 = vcombine.high %v69, %v69
      %v75 = vunpack.c.l.s4 1983009808
      %v76 = vunpack.c.0.s8 %v75
      %v77 = vlaneseq
      %v78 = vshrl.u32 %v77, 7
      %v79 = vsub.s32 %v76, %v78
      %v80 = vrot.slane %v69, %v79
      %v82 = vunpack.c.l.s4 1983009808
      %v83 = vunpack.c.0.s8 %v82
      %v84 = vlaneseq
      %v85 = vshrl.u32 %v84, 7
      %v86 = vsub.s32 %v83, %v85
      %v87 = vrot.slane %v73, %v86
      %v88 = vcombine.high %v80, %v80
      %v89 = vcombine.high %v87, %v87
      %v90 = vcombine.high %v70, %v70
      %v92 = vunpack.c.l.s4 1983009808
      %v93 = vunpack.c.0.s8 %v92
      %v94 = vlaneseq
      %v95 = vshrl.u32 %v94, 7
      %v96 = vsub.s32 %v93, %v95
      %v97 = vrot.slane %v70, %v96
      %v99 = vunpack.c.l.s4 1983009808
      %v100 = vunpack.c.0.s8 %v99
      %v101 = vlaneseq
      %v102 = vshrl.u32 %v101, 7
      %v103 = vsub.s32 %v100, %v102
      %v104 = vrot.slane %v90, %v103
      %v105 = vcombine.high %v97, %v97
      %v106 = vcombine.high %v104, %v104
      %vm115 = vcmask 1041408
      %v116 = vsel %vm115, %v80, 0.0
      %v117 = vsel %vm115, %v88, 0.0
      %v118 = vadd.f32 %v116, %v117
      %v119 = vsel %vm115, %v87, 0.0
      %v120 = vadd.f32 %v118, %v119
      %v121 = vsel %vm115, %v89, 0.0
      %v122 = vadd.f32 %v120, %v121
      %v123 = vsel %vm115, %v97, 0.0
      %v124 = vadd.f32 %v122, %v123
      %v125 = vsel %vm115, %v105, 0.0
      %v126 = vadd.f32 %v124, %v125
      %v127 = vsel %vm115, %v104, 0.0
      %v128 = vadd.f32 %v126, %v127
      %v129 = vsel %vm115, %v106, 0.0
      %v130 = vadd.f32 %v128, %v129
      %131 = vadd.xlane.f32.xlu0 %v130
      %v132 = vpop.xlane.xlu0 %131
      %v133 = vrot.slane %v132, 4
      %v134 = vadd.f32 %v132, %v133
      %v135 = vrot.slane %v134, 2
      %v136 = vadd.f32 %v134, %v135
      %v137 = vrot.slane %v136, 1
      %v138 = vadd.f32 %v136, %v137
      %s139 = vtos %v138
      %s140 = scalar_lea.smem [#allocation8], 0
      %141 = sst [smem:[%s140]] %s139
    $region25: #{tpu_custom_call.1} parent=1 // pred_fallthru
      _
    // Predicated region
    $region26: #{tpu_custom_call.1} parent=1 // pred_check
      _
    $region27: #{tpu_custom_call.1} parent=1 // pred_check_branch
      %143 = sbr.rel (0) target = $region29
    $region28: #{tpu_custom_call.1} parent=1 // pred_region
      %s145 = ssub.s32 16, 16
      %146 = vsyncadd [#allocation5], %s145
      %149 = dma.smem_to_hbm [#allocation8], 16, %s2, [#allocation5]
    $region29: #{tpu_custom_call.1} parent=1 // pred_fallthru
      _
    // Predicated region
    $region30: #{tpu_custom_call.1} parent=1 // pred_check
      _
    $region31: #{tpu_custom_call.1} parent=1 // pred_check_branch
      %151 = sbr.rel (0) target = $region33
    $region32: #{tpu_custom_call.1} parent=1 // pred_region
      %152 = dma.done [#allocation5], 16
    $region33: #{tpu_custom_call.1} parent=1 // pred_fallthru
      _
    %153 = sfence
    %154 = vsyncpa [#allocation4], 1
    %155 = vsyncpa [#allocation7], 1
    %156 = vsyncpa [#allocation5], 1

</llo_original>
